<compile_context>
chip_gen: v5e
topology: v5e:2x2
jax: 0.10.0
libtpu: 0.0.40
codegen_flags: <defaults>
</compile_context>

<pallas_src>
import functools

import jax
import jax.numpy as jnp
from jax.experimental import pallas as pl
from jax.experimental.pallas import tpu as pltpu

LANE = 128  # lane (last dim) granularity


def _round_up(n, m):
    return (n + m - 1) // m * m


# --------------------------------------------------------------------------
# Kernel: the whole (sub-)chain of Linear/ReLU layers for one batch tile.
# --------------------------------------------------------------------------
def _fused_mlp_kernel(*refs, n_layers, final_relu):
    # refs = (x_ref, w0, b0, w1, b1, ..., w_{n-1}, b_{n-1}, o_ref)
    x_ref = refs[0]
    o_ref = refs[-1]
    wb = refs[1:-1]

    h = x_ref[...]
    for i in range(n_layers):
        w = wb[2 * i][...]
        b = wb[2 * i + 1][...]            # (1, Dout), f32
        if h.dtype != w.dtype:            # feed the MXU the weight dtype (bf16 path)
            h = h.astype(w.dtype)
        h = jnp.dot(h, w, preferred_element_type=jnp.float32) + b
        if i < n_layers - 1 or final_relu:
            h = jnp.maximum(h, 0.0)       # ReLU on the f32 accumulator (VPU)
    o_ref[...] = h.astype(o_ref.dtype)    # single cast on store


# --------------------------------------------------------------------------
# Parameter init / padding (done once, outside the forward hot path).
# --------------------------------------------------------------------------
def init_mlp_params(key, size_list):
    """Deterministic init mirroring nn.Linear (weight stored as (in, out))."""
    params = []
    for i in range(len(size_list) - 1):
        fan_in, fan_out = size_list[i], size_list[i + 1]
        key, kw, kb = jax.random.split(key, 3)
        bound = 1.0 / jnp.sqrt(fan_in)
        w = jax.random.uniform(kw, (fan_in, fan_out), jnp.float32, -bound, bound)
        b = jax.random.uniform(kb, (fan_out,), jnp.float32, -bound, bound)
        params.append((w, b))
    return params


def pad_mlp_params(params, compute_dtype=jnp.bfloat16):
    """Zero-pad feature dims to multiples of 128; biases become (1, Dout) f32.

    bf16 weights are the default (MXU-native on every generation, half the
    weight VMEM/DMA); biases and the epilogue stay f32.
    """
    padded = []
    for w, b in params:
        din, dout = w.shape
        dinp, doutp = _round_up(din, LANE), _round_up(dout, LANE)
        wp = jnp.zeros((dinp, doutp), compute_dtype).at[:din, :dout].set(
            w.astype(compute_dtype))
        bp = jnp.zeros((1, doutp), jnp.float32).at[:, :dout].set(
            b.astype(jnp.float32))
        padded.append((wp, bp))
    return padded


# --------------------------------------------------------------------------
# VMEM budgeting / tiling helpers.
# --------------------------------------------------------------------------
def _vmem_cap_bytes():
    try:
        return int(pltpu.get_tpu_info().vmem_capacity_bytes)
    except Exception:
        return 64 * 1024 * 1024  # conservative: v7x per-TensorCore VMEM


def _segment_vmem_bytes(layers, tb, in_itemsize, out_itemsize):
    """Generous upper bound on the VMEM a fused segment needs."""
    w_bytes = sum(int(w.size) * w.dtype.itemsize + int(b.size) * b.dtype.itemsize
                  for w, b in layers)                      # single-buffered residents
    din_p = layers[0][0].shape[0]
    dout_p = layers[-1][0].shape[1]
    max_d = max(max(w.shape[0], w.shape[1]) for w, _ in layers)
    io_bytes = 2 * tb * din_p * in_itemsize + 2 * tb * dout_p * out_itemsize  # 2x buffered
    tmp_bytes = 4 * tb * max_d * 4                         # f32 accum + casts + slack
    return w_bytes + io_bytes + tmp_bytes + (2 << 20)      # + 2 MiB headroom


def _segment_layers(padded_params, tb, in_itemsize, out_itemsize, budget):
    """Greedily pack layers into segments that fit the VMEM budget."""
    segments, cur = [], []
    for layer in padded_params:
        trial = cur + [layer]
        if cur and _segment_vmem_bytes(trial, tb, in_itemsize, out_itemsize) > budget:
            segments.append(cur)
            cur = [layer]
        else:
            cur = trial
    segments.append(cur)
    # TODO(synk): a single layer exceeding the budget would need a K/N grid
    # axis with an f32 VMEM accumulator scratch; not needed at these sizes.
    return segments


def _pick_batch_tile(B, batch_tile, sublane):
    # Even-ish tiles keep padding waste under one sublane-group per tile while
    # still amortizing the ~0.35us/step grid overhead.
    n_tiles = max(1, pl.cdiv(B, batch_tile))
    tb = _round_up(pl.cdiv(B, n_tiles), sublane)
    b_pad = _round_up(B, tb)
    # v7x has 2 TensorCores: a single grid step leaves one idle, so split into
    # >=2 tiles whenever the batch allows it (no-op for tiny B; harmless on
    # single-TC v5e/v6e).
    if b_pad // tb == 1:
        tb2 = _round_up(pl.cdiv(B, 2), sublane)
        if _round_up(B, tb2) // tb2 >= 2:
            tb, b_pad = tb2, _round_up(B, tb2)
    return tb, b_pad


# --------------------------------------------------------------------------
# One fused pallas_call for a segment of consecutive layers.
# --------------------------------------------------------------------------
def _run_segment(h, layers, tb, out_dtype, final_relu, vmem_cap):
    b_pad, din_p = h.shape
    dout_p = layers[-1][0].shape[1]
    n_layers = len(layers)

    flat = []
    in_specs = [pl.BlockSpec((tb, din_p), lambda i: (i, 0))]
    for w, b in layers:
        flat += [w, b]
        # Whole-array VMEM residency: DMA'd once, ONE buffer (no pointless
        # double-buffering of grid-invariant weights/biases).
        in_specs.append(pl.BlockSpec(memory_space=pltpu.MemorySpace.VMEM))
        in_specs.append(pl.BlockSpec(memory_space=pltpu.MemorySpace.VMEM))

    needed = _segment_vmem_bytes(layers, tb, h.dtype.itemsize,
                                 jnp.dtype(out_dtype).itemsize)
    # Only ever raise the scoped limit (default 32 MiB), never above HW cap.
    vmem_limit = int(min(vmem_cap, max(32 * 1024 * 1024, needed)))

    flops = 2 * b_pad * sum(int(w.shape[0]) * int(w.shape[1]) for w, _ in layers)
    bytes_accessed = (int(h.size) * h.dtype.itemsize
                      + sum(int(w.size) * w.dtype.itemsize
                            + int(b.size) * b.dtype.itemsize for w, b in layers)
                      + b_pad * dout_p * jnp.dtype(out_dtype).itemsize)

    return pl.pallas_call(
        functools.partial(_fused_mlp_kernel, n_layers=n_layers,
                          final_relu=final_relu),
        out_shape=jax.ShapeDtypeStruct((b_pad, dout_p), out_dtype),
        grid=(b_pad // tb,),
        in_specs=in_specs,
        out_specs=pl.BlockSpec((tb, dout_p), lambda i: (i, 0)),
        compiler_params=pltpu.CompilerParams(
            dimension_semantics=("parallel",),
            vmem_limit_bytes=vmem_limit),
        cost_estimate=pl.CostEstimate(flops=flops, transcendentals=0,
                                      bytes_accessed=bytes_accessed),
    )(h, *flat)


# --------------------------------------------------------------------------
# Public forward.
# --------------------------------------------------------------------------
@functools.partial(jax.jit, static_argnames=("out_dim", "batch_tile", "out_dtype"))
def mlp_forward(x, padded_params, out_dim, batch_tile=256, out_dtype=None):
    """Fused MLP forward: the whole Linear/ReLU chain in (ideally) one pallas_call."""
    B, din = x.shape
    compute_dtype = padded_params[0][0].dtype
    if out_dtype is None:
        out_dtype = x.dtype
    din_p = padded_params[0][0].shape[0]

    # Sublane granularity of the input tile depends on its dtype (bf16 packs 16).
    sublane = 16 if jnp.dtype(compute_dtype).itemsize < 4 else 8
    tb, b_pad = _pick_batch_tile(B, batch_tile, sublane)

    # Cast + pad x in the wrapper so the per-tile input DMA already carries the
    # compute dtype (half the bytes on the bf16 path).
    x_p = jnp.zeros((b_pad, din_p), compute_dtype).at[:B, :din].set(
        x.astype(compute_dtype))

    vmem_cap = _vmem_cap_bytes()
    segments = _segment_layers(
        padded_params, tb,
        in_itemsize=jnp.dtype(compute_dtype).itemsize,
        out_itemsize=max(jnp.dtype(compute_dtype).itemsize,
                         jnp.dtype(out_dtype).itemsize),
        budget=int(0.85 * vmem_cap))

    h = x_p
    for si, seg in enumerate(segments):
        last = si == len(segments) - 1
        h = _run_segment(
            h, seg, tb,
            out_dtype=out_dtype if last else compute_dtype,
            final_relu=not last,   # ReLU still applies after a mid-chain split
            vmem_cap=vmem_cap)
    return h[:B, :out_dim]


# TODO(synk): dropout / BatchNorm1d branches of MLP.__init__ are disabled by
# default in the reference module and are not implemented here.


if __name__ == "__main__":
    key = jax.random.PRNGKey(0)
    size_list = [16, 32, 32, 8]  # MLP(size_list)
    batch = 2

    kx, kp = jax.random.split(key)
    x = jax.random.normal(kx, (batch, size_list[0]), jnp.float32)
    params = init_mlp_params(kp, size_list)

    # Pure-JAX reference (same math as the PyTorch module).
    ref = x
    for i, (w, b) in enumerate(params):
        ref = ref @ w + b
        if i < len(params) - 1:
            ref = jnp.maximum(ref, 0.0)

    # Default bf16-MXU fast path (bf16 weights/activations, f32 accumulate).
    p_bf16 = pad_mlp_params(params)  # compute_dtype defaults to bfloat16
    out_bf16 = jax.block_until_ready(
        mlp_forward(x, p_bf16, out_dim=size_list[-1]))
    assert out_bf16.shape == (batch, size_list[-1])
    assert out_bf16.dtype == x.dtype
    assert jnp.allclose(out_bf16, ref, atol=1e-1, rtol=5e-2), "bf16 path mismatch"

    # f32 path: tight check against the reference.
    p_f32 = pad_mlp_params(params, compute_dtype=jnp.float32)
    out_f32 = jax.block_until_ready(
        mlp_forward(x, p_f32, out_dim=size_list[-1]))
    assert out_f32.shape == (batch, size_list[-1])
    assert jnp.allclose(out_f32, ref, atol=1e-5, rtol=1e-5), "f32 path mismatch"

    print("KERNEL_OK")
</pallas_src>

<mosaic_0001>
module attributes {stable_mosaic.version = 11 : i64} {
  func.func @_fused_mlp_kernel(%arg0: i32, %arg1: memref<16x128xbf16, #tpu.memory_space<vmem>>, %arg2: memref<128x128xbf16, #tpu.memory_space<vmem>>, %arg3: memref<1x128xf32, #tpu.memory_space<vmem>>, %arg4: memref<128x128xbf16, #tpu.memory_space<vmem>>, %arg5: memref<1x128xf32, #tpu.memory_space<vmem>>, %arg6: memref<128x128xbf16, #tpu.memory_space<vmem>>, %arg7: memref<1x128xf32, #tpu.memory_space<vmem>>, %arg8: memref<16x128xf32, #tpu.memory_space<vmem>>) attributes {dimension_semantics = [#tpu.dimension_semantics<parallel>], iteration_bounds = array<i64: 1>, scalar_prefetch = 0 : i64, scratch_operands = 0 : i64, tpu.core_type = #tpu.core_type<tc>, window_params = [{transform_indices = @transform_0, window_bounds = array<i64: 16, 128>}, {pipeline_mode = #tpu.pipeline_mode<synchronous>, transform_indices = @transform_1, window_bounds = array<i64: 128, 128>}, {pipeline_mode = #tpu.pipeline_mode<synchronous>, transform_indices = @transform_2, window_bounds = array<i64: 1, 128>}, {pipeline_mode = #tpu.pipeline_mode<synchronous>, transform_indices = @transform_3, window_bounds = array<i64: 128, 128>}, {pipeline_mode = #tpu.pipeline_mode<synchronous>, transform_indices = @transform_4, window_bounds = array<i64: 1, 128>}, {pipeline_mode = #tpu.pipeline_mode<synchronous>, transform_indices = @transform_5, window_bounds = array<i64: 128, 128>}, {pipeline_mode = #tpu.pipeline_mode<synchronous>, transform_indices = @transform_6, window_bounds = array<i64: 1, 128>}, {transform_indices = @transform_7, window_bounds = array<i64: 16, 128>}]} {
    %c0 = arith.constant 0 : index
    %c0_0 = arith.constant 0 : index
    %0 = vector.load %arg1[%c0, %c0_0] : memref<16x128xbf16, #tpu.memory_space<vmem>>, vector<16x128xbf16>
    %c0_1 = arith.constant 0 : index
    %c0_2 = arith.constant 0 : index
    %1 = vector.load %arg2[%c0_1, %c0_2] : memref<128x128xbf16, #tpu.memory_space<vmem>>, vector<128x128xbf16>
    %c0_3 = arith.constant 0 : index
    %c0_4 = arith.constant 0 : index
    %2 = vector.load %arg3[%c0_3, %c0_4] : memref<1x128xf32, #tpu.memory_space<vmem>>, vector<1x128xf32>
    %cst = arith.constant dense<0.000000e+00> : vector<16x128xf32>
    %3 = tpu.matmul %0, %1, %cst {dimension_numbers = #tpu.dot_dimension_numbers<[1], [0], [0], [1], [0, 0, 1, 1], [], []>} : vector<16x128xbf16>, vector<128x128xbf16>, vector<16x128xf32> -> vector<16x128xf32>
    %4 = vector.broadcast %2 : vector<1x128xf32> to vector<16x128xf32>
    %5 = arith.addf %3, %4 : vector<16x128xf32>
    %cst_5 = arith.constant 0.000000e+00 : f32
    %6 = vector.broadcast %cst_5 : f32 to vector<16x128xf32>
    %7 = arith.maximumf %5, %6 : vector<16x128xf32>
    %c0_6 = arith.constant 0 : index
    %c0_7 = arith.constant 0 : index
    %8 = vector.load %arg4[%c0_6, %c0_7] : memref<128x128xbf16, #tpu.memory_space<vmem>>, vector<128x128xbf16>
    %c0_8 = arith.constant 0 : index
    %c0_9 = arith.constant 0 : index
    %9 = vector.load %arg5[%c0_8, %c0_9] : memref<1x128xf32, #tpu.memory_space<vmem>>, vector<1x128xf32>
    %10 = arith.truncf %7 : vector<16x128xf32> to vector<16x128xbf16>
    %cst_10 = arith.constant dense<0.000000e+00> : vector<16x128xf32>
    %11 = tpu.matmul %10, %8, %cst_10 {dimension_numbers = #tpu.dot_dimension_numbers<[1], [0], [0], [1], [0, 0, 1, 1], [], []>} : vector<16x128xbf16>, vector<128x128xbf16>, vector<16x128xf32> -> vector<16x128xf32>
    %12 = vector.broadcast %9 : vector<1x128xf32> to vector<16x128xf32>
    %13 = arith.addf %11, %12 : vector<16x128xf32>
    %cst_11 = arith.constant 0.000000e+00 : f32
    %14 = vector.broadcast %cst_11 : f32 to vector<16x128xf32>
    %15 = arith.maximumf %13, %14 : vector<16x128xf32>
    %c0_12 = arith.constant 0 : index
    %c0_13 = arith.constant 0 : index
    %16 = vector.load %arg6[%c0_12, %c0_13] : memref<128x128xbf16, #tpu.memory_space<vmem>>, vector<128x128xbf16>
    %c0_14 = arith.constant 0 : index
    %c0_15 = arith.constant 0 : index
    %17 = vector.load %arg7[%c0_14, %c0_15] : memref<1x128xf32, #tpu.memory_space<vmem>>, vector<1x128xf32>
    %18 = arith.truncf %15 : vector<16x128xf32> to vector<16x128xbf16>
    %cst_16 = arith.constant dense<0.000000e+00> : vector<16x128xf32>
    %19 = tpu.matmul %18, %16, %cst_16 {dimension_numbers = #tpu.dot_dimension_numbers<[1], [0], [0], [1], [0, 0, 1, 1], [], []>} : vector<16x128xbf16>, vector<128x128xbf16>, vector<16x128xf32> -> vector<16x128xf32>
    %20 = vector.broadcast %17 : vector<1x128xf32> to vector<16x128xf32>
    %21 = arith.addf %19, %20 : vector<16x128xf32>
    %c0_17 = arith.constant 0 : index
    %c0_18 = arith.constant 0 : index
    %22 = vector.load %arg8[%c0_17, %c0_18] : memref<16x128xf32, #tpu.memory_space<vmem>>, vector<16x128xf32>
    tpu.vector_store %arg8[%c0_17, %c0_18], %21 {strides = array<i32>} : memref<16x128xf32, #tpu.memory_space<vmem>>, vector<16x128xf32>,
    return
  }
  func.func @transform_0(%arg0: i32) -> (i32, i32) {
    %c0_i32 = arith.constant 0 : i32
    %c0_i32_0 = arith.constant 0 : i32
    return %arg0, %c0_i32 : i32, i32
  }
  func.func @transform_1(%arg0: i32) -> (i32, i32) {
    %c0_i32 = arith.constant 0 : i32
    %c0_i32_0 = arith.constant 0 : i32
    %c0_i32_1 = arith.constant 0 : i32
    return %c0_i32, %c0_i32_0 : i32, i32
  }
  func.func @transform_2(%arg0: i32) -> (i32, i32) {
    %c0_i32 = arith.constant 0 : i32
    %c0_i32_0 = arith.constant 0 : i32
    %c0_i32_1 = arith.constant 0 : i32
    return %c0_i32, %c0_i32_0 : i32, i32
  }
  func.func @transform_3(%arg0: i32) -> (i32, i32) {
    %c0_i32 = arith.constant 0 : i32
    %c0_i32_0 = arith.constant 0 : i32
    %c0_i32_1 = arith.constant 0 : i32
    return %c0_i32, %c0_i32_0 : i32, i32
  }
  func.func @transform_4(%arg0: i32) -> (i32, i32) {
    %c0_i32 = arith.constant 0 : i32
    %c0_i32_0 = arith.constant 0 : i32
    %c0_i32_1 = arith.constant 0 : i32
    return %c0_i32, %c0_i32_0 : i32, i32
  }
  func.func @transform_5(%arg0: i32) -> (i32, i32) {
    %c0_i32 = arith.constant 0 : i32
    %c0_i32_0 = arith.constant 0 : i32
    %c0_i32_1 = arith.constant 0 : i32
    return %c0_i32, %c0_i32_0 : i32, i32
  }
  func.func @transform_6(%arg0: i32) -> (i32, i32) {
    %c0_i32 = arith.constant 0 : i32
    %c0_i32_0 = arith.constant 0 : i32
    %c0_i32_1 = arith.constant 0 : i32
    return %c0_i32, %c0_i32_0 : i32, i32
  }
  func.func @transform_7(%arg0: i32) -> (i32, i32) {
    %c0_i32 = arith.constant 0 : i32
    %c0_i32_0 = arith.constant 0 : i32
    return %arg0, %c0_i32 : i32, i32
  }
}

</mosaic_0001>

<llo_original>
// kernel: mlp_forward.1
$region0: #{mlp_forward.1}
  #allocation0 [shape = 'u32[]', space=smem, size = 0x4, offset = 0x4, fixed_abs, tag = 'smem constant byte address 0x4 - core index']
  #allocation1 [shape = 'u32[72,128]{1,0:T(1,128)}', space=vmem, size = 0x9000, scoped, tag = 'internal scratch']
  %s0 = inlined_call_operand.vmem [shape: bf16[16,128], index: 0, kind: input, shape index: {}]
  %s1 = inlined_call_operand.hbm [shape: bf16[128,128], index: 1, kind: input, shape index: {}]
  %s2 = inlined_call_operand.vmem [shape: f32[1,128], index: 2, kind: input, shape index: {}]
  %s3 = inlined_call_operand.hbm [shape: bf16[128,128], index: 3, kind: input, shape index: {}]
  %s4 = inlined_call_operand.vmem [shape: f32[1,128], index: 4, kind: input, shape index: {}]
  %s5 = inlined_call_operand.hbm [shape: bf16[128,128], index: 5, kind: input, shape index: {}]
  %s6 = inlined_call_operand.vmem [shape: f32[1,128], index: 6, kind: input, shape index: {}]
  %s7 = inlined_call_operand.vmem [shape: f32[16,128], index: 7, kind: output, shape index: {}]
  %s8 = sld [smem:[#allocation0]]
  $region50: #{mlp_forward.1} parent=0
    _
  %s10 = ssub.s32 1, %s8
  %s11 = scalar_select 0, %s10, %s8
  $region1: #{mlp_forward.1} parent=0
    #allocation2 [shape = 'u8[32768]{0}', space=vmem, size = 0x8000, scoped, tag = 'input window, operand 1, single buffered']
    #allocation3 [shape = 's32[1]{0}', space=sflag, size = 0x4, scoped, tag = 'scoped memory for mlp_forward.1']
    #allocation4 [shape = 'u8[32768]{0}', space=vmem, size = 0x8000, scoped, tag = 'input window, operand 3, single buffered']
    #allocation5 [shape = 's32[1]{0}', space=sflag, size = 0x4, scoped, tag = 'scoped memory for mlp_forward.1']
    #allocation6 [shape = 'u8[32768]{0}', space=vmem, size = 0x8000, scoped, tag = 'input window, operand 5, single buffered']
    %12 = vsyncpa [#allocation3], 0
    %13 = vsyncpa [#allocation5], 0
    // Predicated region
    $region2: #{mlp_forward.1} parent=1 // pred_check
      _
    $region3: #{mlp_forward.1} parent=1 // pred_check_branch
      %15 = sbr.rel (0) target = $region5
    $region4: #{mlp_forward.1} parent=1 // pred_region
      _
    $region5: #{mlp_forward.1} parent=1 // pred_fallthru
      _
    // Predicated region
    $region6: #{mlp_forward.1} parent=1 // pred_check
      _
    $region7: #{mlp_forward.1} parent=1 // pred_check_branch
      %17 = sbr.rel (0) target = $region9
    $region8: #{mlp_forward.1} parent=1 // pred_region
      %19 = vsyncadd [#allocation3], 0
      %s20 = sshll.u32 %s1, 4
      %s21 = int_to_ptr.hbm [resolvable:$true] %s20
      %s22 = sshll.u32 [#allocation2], 4
      %s23 = int_to_ptr.vmem [resolvable:$true] %s22
      %28 = dma.hbm_to_vmem [thread:$0]  %s21, 1024, %s23, [#allocation3], 64, 64, 4
    $region9: #{mlp_forward.1} parent=1 // pred_fallthru
      _
    // Predicated region
    $region10: #{mlp_forward.1} parent=1 // pred_check
      _
    $region11: #{mlp_forward.1} parent=1 // pred_check_branch
      %30 = sbr.rel (0) target = $region13
    $region12: #{mlp_forward.1} parent=1 // pred_region
      _
    $region13: #{mlp_forward.1} parent=1 // pred_fallthru
      _
    // Predicated region
    $region14: #{mlp_forward.1} parent=1 // pred_check
      _
    $region15: #{mlp_forward.1} parent=1 // pred_check_branch
      %32 = sbr.rel (0) target = $region17
    $region16: #{mlp_forward.1} parent=1 // pred_region
      %34 = vsyncadd [#allocation5], 0
      %s35 = sshll.u32 %s3, 4
      %s36 = int_to_ptr.hbm [resolvable:$true] %s35
      %s37 = sshll.u32 [#allocation4], 4
      %s38 = int_to_ptr.vmem [resolvable:$true] %s37
      %43 = dma.hbm_to_vmem [thread:$0]  %s36, 1024, %s38, [#allocation5], 64, 64, 4
    $region17: #{mlp_forward.1} parent=1 // pred_fallthru
      _
    // Predicated region
    $region18: #{mlp_forward.1} parent=1 // pred_check
      _
    $region19: #{mlp_forward.1} parent=1 // pred_check_branch
      %45 = sbr.rel (0) target = $region21
    $region20: #{mlp_forward.1} parent=1 // pred_region
      _
    $region21: #{mlp_forward.1} parent=1 // pred_fallthru
      _
    // Predicated region
    $region22: #{mlp_forward.1} parent=1 // pred_check
      _
    $region23: #{mlp_forward.1} parent=1 // pred_check_branch
      %47 = sbr.rel (0) target = $region25
    $region24: #{mlp_forward.1} parent=1 // pred_region
      %49 = vsyncadd [#allocation5], 0
      %s50 = sshll.u32 %s5, 4
      %s51 = int_to_ptr.hbm [resolvable:$true] %s50
      %s52 = sshll.u32 [#allocation6], 4
      %s53 = int_to_ptr.vmem [resolvable:$true] %s52
      %58 = dma.hbm_to_vmem [thread:$0]  %s51, 1024, %s53, [#allocation5], 64, 64, 4
    $region25: #{mlp_forward.1} parent=1 // pred_fallthru
      _
    // Predicated region
    $region26: #{mlp_forward.1} parent=1 // pred_check
      _
    $region27: #{mlp_forward.1} parent=1 // pred_check_branch
      %60 = sbr.rel (0) target = $region29
    $region28: #{mlp_forward.1} parent=1 // pred_region
      _
    $region29: #{mlp_forward.1} parent=1 // pred_fallthru
      _
    // Predicated region
    $region30: #{mlp_forward.1} parent=1 // pred_check
      _
    $region31: #{mlp_forward.1} parent=1 // pred_check_branch
      %62 = sbr.rel (0) target = $region33
    $region32: #{mlp_forward.1} parent=1 // pred_region
      %64 = dma.done [#allocation3], 1024
    $region33: #{mlp_forward.1} parent=1 // pred_fallthru
      _
    // Predicated region
    $region34: #{mlp_forward.1} parent=1 // pred_check
      _
    $region35: #{mlp_forward.1} parent=1 // pred_check_branch
      %66 = sbr.rel (0) target = $region37
    $region36: #{mlp_forward.1} parent=1 // pred_region
      %68 = dma.done [#allocation5], 1024
    $region37: #{mlp_forward.1} parent=1 // pred_fallthru
      _
    // Predicated region
    $region38: #{mlp_forward.1} parent=1 // pred_check
      _
    $region39: #{mlp_forward.1} parent=1 // pred_check_branch
      %70 = sbr.rel (0) target = $region41
    $region40: #{mlp_forward.1} parent=1 // pred_region
      %72 = dma.done [#allocation5], 1024
    $region41: #{mlp_forward.1} parent=1 // pred_fallthru
      _
    %v73 = vld [vmem:[%s0] sm:$0xf]
    %v74 = vld [vmem:[%s0 + $0x4] sm:$0xf]
    %v75 = vld [vmem:[#allocation2] sm:$0xf]
    %v76 = vld [vmem:[#allocation2 + $0x4] sm:$0xf]
    %v77 = vld [vmem:[#allocation2 + $0x8] sm:$0xf]
    %v78 = vld [vmem:[#allocation2 + $0xc] sm:$0xf]
    %v79 = vld [vmem:[#allocation2 + $0x10] sm:$0xf]
    %v80 = vld [vmem:[#allocation2 + $0x14] sm:$0xf]
    %v81 = vld [vmem:[#allocation2 + $0x18] sm:$0xf]
    %v82 = vld [vmem:[#allocation2 + $0x1c] sm:$0xf]
    %v83 = vld [vmem:[#allocation2 + $0x20] sm:$0xf]
    %v84 = vld [vmem:[#allocation2 + $0x24] sm:$0xf]
    %v85 = vld [vmem:[#allocation2 + $0x28] sm:$0xf]
    %v86 = vld [vmem:[#allocation2 + $0x2c] sm:$0xf]
    %v87 = vld [vmem:[#allocation2 + $0x30] sm:$0xf]
    %v88 = vld [vmem:[#allocation2 + $0x34] sm:$0xf]
    %v89 = vld [vmem:[#allocation2 + $0x38] sm:$0xf]
    %v90 = vld [vmem:[#allocation2 + $0x3c] sm:$0xf]
    %v91 = vld [vmem:[%s2] sm:$0x1]
    %v93 = vperm.slane %v91, 0
    %v97 = vunpack.c.l.b16 %v73
    %v98 = vunpack.c.l.b16 %v74
    %v99 = vpack.c.b16 %v98, %v97
    %v117 = vunpack.c.l.b16 %v75
    %v118 = vunpack.c.l.b16 %v76
    %v119 = vunpack.c.l.b16 %v77
    %v120 = vunpack.c.l.b16 %v78
    %v121 = vunpack.c.l.b16 %v79
    %v122 = vunpack.c.l.b16 %v80
    %v123 = vunpack.c.l.b16 %v81
    %v124 = vunpack.c.l.b16 %v82
    %v125 = vunpack.c.l.b16 %v83
    %v126 = vunpack.c.l.b16 %v84
    %v127 = vunpack.c.l.b16 %v85
    %v128 = vunpack.c.l.b16 %v86
    %v129 = vunpack.c.l.b16 %v87
    %v130 = vunpack.c.l.b16 %v88
    %v131 = vunpack.c.l.b16 %v89
    %v132 = vunpack.c.l.b16 %v90
    %v133 = vpack.c.b16 %v118, %v117
    %v134 = vpack.c.b16 %v120, %v119
    %v135 = vpack.c.b16 %v122, %v121
    %v136 = vpack.c.b16 %v124, %v123
    %v137 = vpack.c.b16 %v126, %v125
    %v138 = vpack.c.b16 %v128, %v127
    %v139 = vpack.c.b16 %v130, %v129
    %v140 = vpack.c.b16 %v132, %v131
    %149 = vmatpush.bf16.msra.mxu0 %v140
    %150 = vmatpush.bf16.msra.mxu0 %v139
    %151 = vmatpush.bf16.msra.mxu0 %v138
    %152 = vmatpush.bf16.msra.mxu0 %v137
    %153 = vmatpush.bf16.msra.mxu0 %v136
    %154 = vmatpush.bf16.msra.mxu0 %v135
    %155 = vmatpush.bf16.msra.mxu0 %v134
    %156 = vmatpush.bf16.msra.mxu0 %v133
    %157 = vmatmul.bf16.gmra.mxu0 %v99
    %v158 = vpop.f32.mrf.mxu0
    %v159 = vadd.f32 %v93, %v158
    %v160 = vpop.f32.mrf.mxu0
    %v161 = vadd.f32 %v93, %v160
    %162 = vdwg.mxu0
    %v163 = vmax.f32 %v159, 0.0
    %v164 = vmax.f32 %v161, 0.0
    %v165 = vld [vmem:[#allocation4] sm:$0xf]
    %v166 = vld [vmem:[#allocation4 + $0x4] sm:$0xf]
    %v167 = vld [vmem:[#allocation4 + $0x8] sm:$0xf]
    %v168 = vld [vmem:[#allocation4 + $0xc] sm:$0xf]
    %v169 = vld [vmem:[#allocation4 + $0x10] sm:$0xf]
    %v170 = vld [vmem:[#allocation4 + $0x14] sm:$0xf]
    %v171 = vld [vmem:[#allocation4 + $0x18] sm:$0xf]
    %v172 = vld [vmem:[#allocation4 + $0x1c] sm:$0xf]
    %v173 = vld [vmem:[#allocation4 + $0x20] sm:$0xf]
    %v174 = vld [vmem:[#allocation4 + $0x24] sm:$0xf]
    %v175 = vld [vmem:[#allocation4 + $0x28] sm:$0xf]
    %v176 = vld [vmem:[#allocation4 + $0x2c] sm:$0xf]
    %v177 = vld [vmem:[#allocation4 + $0x30] sm:$0xf]
    %v178 = vld [vmem:[#allocation4 + $0x34] sm:$0xf]
    %v179 = vld [vmem:[#allocation4 + $0x38] sm:$0xf]
    %v180 = vld [vmem:[#allocation4 + $0x3c] sm:$0xf]
    %v181 = vld [vmem:[%s4] sm:$0x1]
    %v182 = vpack.c.bf16 %v164, %v163
    %v184 = vperm.slane %v181, 0
    %v202 = vunpack.c.l.b16 %v165
    %v203 = vunpack.c.l.b16 %v166
    %v204 = vunpack.c.l.b16 %v167
    %v205 = vunpack.c.l.b16 %v168
    %v206 = vunpack.c.l.b16 %v169
    %v207 = vunpack.c.l.b16 %v170
    %v208 = vunpack.c.l.b16 %v171
    %v209 = vunpack.c.l.b16 %v172
    %v210 = vunpack.c.l.b16 %v173
    %v211 = vunpack.c.l.b16 %v174
    %v212 = vunpack.c.l.b16 %v175
    %v213 = vunpack.c.l.b16 %v176
    %v214 = vunpack.c.l.b16 %v177
    %v215 = vunpack.c.l.b16 %v178
    %v216 = vunpack.c.l.b16 %v179
    %v217 = vunpack.c.l.b16 %v180
    %v218 = vpack.c.b16 %v203, %v202
    %v219 = vpack.c.b16 %v205, %v204
    %v220 = vpack.c.b16 %v207, %v206
    %v221 = vpack.c.b16 %v209, %v208
    %v222 = vpack.c.b16 %v211, %v210
    %v223 = vpack.c.b16 %v213, %v212
    %v224 = vpack.c.b16 %v215, %v214
    %v225 = vpack.c.b16 %v217, %v216
    %234 = vmatpush.bf16.msra.mxu0 %v225
    %235 = vmatpush.bf16.msra.mxu0 %v224
    %236 = vmatpush.bf16.msra.mxu0 %v223
    %237 = vmatpush.bf16.msra.mxu0 %v222
    %238 = vmatpush.bf16.msra.mxu0 %v221
    %239 = vmatpush.bf16.msra.mxu0 %v220
    %240 = vmatpush.bf16.msra.mxu0 %v219
    %241 = vmatpush.bf16.msra.mxu0 %v218
    %242 = vmatmul.bf16.gmra.mxu0 %v182
    %v243 = vpop.f32.mrf.mxu0
    %v244 = vadd.f32 %v184, %v243
    %v245 = vpop.f32.mrf.mxu0
    %v246 = vadd.f32 %v184, %v245
    %247 = vdwg.mxu0
    %v248 = vmax.f32 %v244, 0.0
    %v249 = vmax.f32 %v246, 0.0
    %v250 = vld [vmem:[#allocation6] sm:$0xf]
    %v251 = vld [vmem:[#allocation6 + $0x4] sm:$0xf]
    %v252 = vld [vmem:[#allocation6 + $0x8] sm:$0xf]
    %v253 = vld [vmem:[#allocation6 + $0xc] sm:$0xf]
    %v254 = vld [vmem:[#allocation6 + $0x10] sm:$0xf]
    %v255 = vld [vmem:[#allocation6 + $0x14] sm:$0xf]
    %v256 = vld [vmem:[#allocation6 + $0x18] sm:$0xf]
    %v257 = vld [vmem:[#allocation6 + $0x1c] sm:$0xf]
    %v258 = vld [vmem:[#allocation6 + $0x20] sm:$0xf]
    %v259 = vld [vmem:[#allocation6 + $0x24] sm:$0xf]
    %v260 = vld [vmem:[#allocation6 + $0x28] sm:$0xf]
    %v261 = vld [vmem:[#allocation6 + $0x2c] sm:$0xf]
    %v262 = vld [vmem:[#allocation6 + $0x30] sm:$0xf]
    %v263 = vld [vmem:[#allocation6 + $0x34] sm:$0xf]
    %v264 = vld [vmem:[#allocation6 + $0x38] sm:$0xf]
    %v265 = vld [vmem:[#allocation6 + $0x3c] sm:$0xf]
    %v266 = vld [vmem:[%s6] sm:$0x1]
    %v267 = vpack.c.bf16 %v249, %v248
    %v269 = vperm.slane %v266, 0
    %v287 = vunpack.c.l.b16 %v250
    %v288 = vunpack.c.l.b16 %v251
    %v289 = vunpack.c.l.b16 %v252
    %v290 = vunpack.c.l.b16 %v253
    %v291 = vunpack.c.l.b16 %v254
    %v292 = vunpack.c.l.b16 %v255
    %v293 = vunpack.c.l.b16 %v256
    %v294 = vunpack.c.l.b16 %v257
    %v295 = vunpack.c.l.b16 %v258
    %v296 = vunpack.c.l.b16 %v259
    %v297 = vunpack.c.l.b16 %v260
    %v298 = vunpack.c.l.b16 %v261
    %v299 = vunpack.c.l.b16 %v262
    %v300 = vunpack.c.l.b16 %v263
    %v301 = vunpack.c.l.b16 %v264
    %v302 = vunpack.c.l.b16 %v265
    %v303 = vpack.c.b16 %v288, %v287
    %v304 = vpack.c.b16 %v290, %v289
    %v305 = vpack.c.b16 %v292, %v291
    %v306 = vpack.c.b16 %v294, %v293
    %v307 = vpack.c.b16 %v296, %v295
    %v308 = vpack.c.b16 %v298, %v297
    %v309 = vpack.c.b16 %v300, %v299
    %v310 = vpack.c.b16 %v302, %v301
    %319 = vmatpush.bf16.msra.mxu0 %v310
    %320 = vmatpush.bf16.msra.mxu0 %v309
    %321 = vmatpush.bf16.msra.mxu0 %v308
    %322 = vmatpush.bf16.msra.mxu0 %v307
    %323 = vmatpush.bf16.msra.mxu0 %v306
    %324 = vmatpush.bf16.msra.mxu0 %v305
    %325 = vmatpush.bf16.msra.mxu0 %v304
    %326 = vmatpush.bf16.msra.mxu0 %v303
    %327 = vmatmul.bf16.gmra.mxu0 %v267
    %v328 = vpop.f32.mrf.mxu0
    %v329 = vadd.f32 %v269, %v328
    %v330 = vpop.f32.mrf.mxu0
    %v331 = vadd.f32 %v269, %v330
    %332 = vdwg.mxu0
    %333 = vst [vmem:[%s7] sm:$0xff] %v329
    %334 = vst [vmem:[%s7 + $0x8] sm:$0xff] %v331
    // Predicated region
    $region42: #{mlp_forward.1} parent=1 // pred_check
      _
    $region43: #{mlp_forward.1} parent=1 // pred_check_branch
      %336 = sbr.rel (0) target = $region45
    $region44: #{mlp_forward.1} parent=1 // pred_region
      _
    $region45: #{mlp_forward.1} parent=1 // pred_fallthru
      _
    // Predicated region
    $region46: #{mlp_forward.1} parent=1 // pred_check
      _
    $region47: #{mlp_forward.1} parent=1 // pred_check_branch
      %338 = sbr.rel (0) target = $region49
    $region48: #{mlp_forward.1} parent=1 // pred_region
      _
    $region49: #{mlp_forward.1} parent=1 // pred_fallthru
      _
    %339 = vsyncpa [#allocation3], 1
    %340 = vsyncpa [#allocation5], 1

</llo_original>
